<compile_context>
chip_gen: v7x
topology: tpu7x:2x2x1
jax: 0.10.0
libtpu: 0.0.40
codegen_flags: <defaults>
</compile_context>

<pallas_src>
import math

import jax
import jax.numpy as jnp
from jax.experimental import pallas as pl
from jax.experimental.pallas import tpu as pltpu


_VMEM_LIMIT_BYTES = 48 * 1024 * 1024   # scoped-VMEM limit: safe on v5e/v6e/v7x
_VMEM_TILE_BUDGET = 40 * 1024 * 1024   # tiles + f32 temps must stay under this


def _cdiv(a, b):
    return -(-a // b)


def _round_up(v, m):
    return _cdiv(v, m) * m


def _dyt_kernel(alpha_ref, x_ref, w_ref, b_ref, o_ref):
    # alpha_ref: SMEM (1, 1) f32 scalar.
    # x_ref/o_ref: VMEM (tile_m, tile_l) tile in the I/O dtype.
    # w_ref/b_ref: VMEM f32, either a (1, tile_l) row or a (tile_m, 1) column.
    alpha = alpha_ref[0, 0]
    xf = x_ref[...].astype(jnp.float32)      # f32 math for tanh accuracy / v5e
    t = jnp.tanh(alpha * xf)                 # EUP
    o_ref[...] = (t * w_ref[...] + b_ref[...]).astype(o_ref.dtype)


def _plan_tiles(m, lane, itemsize):
    """Pick (tile_m, tile_l) for an (m, lane) array of `itemsize`-byte elems."""
    sub = max(8, 32 // itemsize)             # sublane packing: f32 8, bf16 16, i8 32
    cost_per_elem = 4 * itemsize + 12        # 2x-buffered in+out + f32 temps
    max_tile_elems = max(sub * 128, _VMEM_TILE_BUDGET // cost_per_elem)

    # Lane tile: keep it lane-dense (multiple of 128); only split the lane dim
    # when it alone would blow the VMEM budget (e.g. NCHW with huge H*W).
    if lane <= 128:
        tile_l = lane
    else:
        max_tl = max(128, ((max_tile_elems // sub) // 128) * 128)
        tile_l = lane if lane <= max_tl else max_tl

    rows = max(sub, ((max_tile_elems // tile_l) // sub) * sub)
    tile_m = min(rows, _round_up(m, sub))
    if m > sub:
        # Keep >= 2 row blocks so v7x's two TensorCores can split the grid.
        tile_m = min(tile_m, _round_up(_cdiv(m, 2), sub))
    return tile_m, tile_l


@jax.jit
def dyt_forward(x, alpha, weight, bias):
    """JAX/Pallas equivalent of DyT.forward.

    x:      any shape; if 4D it is NCHW with C == num_features, otherwise the
            last dim must equal num_features.
    alpha:  shape (1,);  weight/bias: shape (num_features,).
    """
    orig_shape = x.shape
    c = weight.shape[0]
    w_f32 = weight.astype(jnp.float32)
    b_f32 = bias.astype(jnp.float32)

    if x.ndim == 4:
        n, ch, h, w = x.shape
        assert ch == c
        hw = h * w
        if hw % 128 == 0:
            # Lane-dense (N*C, H*W); weight/bias become a per-row column.
            x2 = x.reshape(n * ch, hw)
            w2 = jnp.broadcast_to(w_f32[None, :], (n, ch)).reshape(n * ch, 1)
            b2 = jnp.broadcast_to(b_f32[None, :], (n, ch)).reshape(n * ch, 1)
            param_mode = "col"
        else:
            # Unaligned spatial dim: fold C into the lane dim; weight repeats
            # per spatial position so stores stay (mostly) lane-dense.
            x2 = x.reshape(n, ch * hw)
            w2 = jnp.repeat(w_f32, hw).reshape(1, ch * hw)
            b2 = jnp.repeat(b_f32, hw).reshape(1, ch * hw)
            param_mode = "row"
    else:
        assert x.shape[-1] == c
        x2 = x.reshape(-1, c)
        m0 = x2.shape[0]
        param_mode = "row"
        if c % 128 != 0:
            # Widen the lane dim to lcm(C, 128) when the row count allows it,
            # so small/unaligned C doesn't force masked partial stores.
            lane_w = (c * 128) // math.gcd(c, 128)
            k = lane_w // c
            if m0 >= k and m0 % k == 0:
                x2 = x2.reshape(m0 // k, lane_w)
                w2 = jnp.tile(w_f32, k).reshape(1, lane_w)
                b2 = jnp.tile(b_f32, k).reshape(1, lane_w)
            else:
                w2 = w_f32.reshape(1, c)
                b2 = b_f32.reshape(1, c)
        else:
            w2 = w_f32.reshape(1, c)
            b2 = b_f32.reshape(1, c)

    m, lane = x2.shape
    itemsize = jnp.dtype(x2.dtype).itemsize
    tile_m, tile_l = _plan_tiles(m, lane, itemsize)
    grid = (pl.cdiv(m, tile_m), pl.cdiv(lane, tile_l))

    x_spec = pl.BlockSpec((tile_m, tile_l), lambda i, j: (i, j))
    if param_mode == "col":
        p_spec = pl.BlockSpec((tile_m, 1), lambda i, j: (i, 0))
    else:
        p_spec = pl.BlockSpec((1, tile_l), lambda i, j: (0, j))

    total = m * lane
    cost = pl.CostEstimate(
        flops=3 * total,
        transcendentals=total,
        bytes_accessed=2 * total * itemsize + 4 * (w2.size + b2.size) + 4,
    )

    alpha_smem = alpha.reshape(1, 1).astype(jnp.float32)

    out2 = pl.pallas_call(
        _dyt_kernel,
        out_shape=jax.ShapeDtypeStruct((m, lane), x2.dtype),
        grid=grid,
        in_specs=[
            pl.BlockSpec(memory_space=pltpu.MemorySpace.SMEM),  # alpha scalar
            x_spec,
            p_spec,   # weight
            p_spec,   # bias
        ],
        out_specs=pl.BlockSpec((tile_m, tile_l), lambda i, j: (i, j)),
        compiler_params=pltpu.CompilerParams(
            dimension_semantics=("parallel", "parallel"),
            vmem_limit_bytes=_VMEM_LIMIT_BYTES),
        cost_estimate=cost,
    )(alpha_smem, x2, w2, b2)

    return out2.reshape(orig_shape)


def _reference(x, alpha, weight, bias):
    xf = x.astype(jnp.float32)
    t = jnp.tanh(alpha.astype(jnp.float32)[0] * xf)
    if x.ndim == 4:
        w = weight.astype(jnp.float32).reshape(1, -1, 1, 1)
        b = bias.astype(jnp.float32).reshape(1, -1, 1, 1)
    else:
        w = weight.astype(jnp.float32)
        b = bias.astype(jnp.float32)
    return t * w + b


if __name__ == "__main__":
    key = jax.random.PRNGKey(0)
    num_features = 4
    alpha_init_value = 0.5

    # Deterministic params, matching DyT.__init__ (perturbed so broadcasting
    # over channels is actually exercised).
    alpha = jnp.ones((1,), jnp.float32) * alpha_init_value
    k1, k2, k3 = jax.random.split(key, 3)
    weight = jnp.ones((num_features,), jnp.float32) \
        + 0.1 * jax.random.normal(k1, (num_features,), jnp.float32)
    bias = jnp.zeros((num_features,), jnp.float32) \
        + 0.1 * jax.random.normal(k2, (num_features,), jnp.float32)

    # 4D NCHW, H*W multiple of 128 -> (N*C, H*W) column-weight layout (f32).
    x4 = jax.random.normal(k3, (2, num_features, 16, 16), jnp.float32)
    y4 = jax.block_until_ready(dyt_forward(x4, alpha, weight, bias))
    assert y4.shape == x4.shape and y4.dtype == x4.dtype
    assert jnp.allclose(y4, _reference(x4, alpha, weight, bias),
                        atol=1e-5, rtol=1e-5), "4D f32 mismatch"

    # Same input in bf16 (dtype-preserving HBM I/O, 16-row sublane packing).
    x4b = x4.astype(jnp.bfloat16)
    y4b = jax.block_until_ready(dyt_forward(x4b, alpha, weight, bias))
    assert y4b.dtype == jnp.bfloat16
    assert jnp.allclose(y4b.astype(jnp.float32),
                        _reference(x4b, alpha, weight, bias),
                        atol=2e-2, rtol=2e-2), "4D bf16 mismatch"

    # 4D NCHW with H*W NOT a multiple of 128 -> (N, C*H*W) row-weight layout.
    x4o = jax.random.normal(jax.random.PRNGKey(7),
                            (2, num_features, 7, 7), jnp.float32)
    y4o = jax.block_until_ready(dyt_forward(x4o, alpha, weight, bias))
    assert jnp.allclose(y4o, _reference(x4o, alpha, weight, bias),
                        atol=1e-5, rtol=1e-5), "4D 7x7 mismatch"

    # 2D feature-last, row count not foldable -> (M, C) fallback layout.
    x2 = jax.random.normal(jax.random.PRNGKey(1), (8, num_features), jnp.float32)
    y2 = jax.block_until_ready(dyt_forward(x2, alpha, weight, bias))
    assert jnp.allclose(y2, _reference(x2, alpha, weight, bias),
                        atol=1e-5, rtol=1e-5), "2D mismatch"

    # 3D feature-last with 64 rows -> lane-widened (64/32, 128) layout.
    x3 = jax.random.normal(jax.random.PRNGKey(2),
                           (2, 32, num_features), jnp.float32)
    y3 = jax.block_until_ready(dyt_forward(x3, alpha, weight, bias))
    assert jnp.allclose(y3, _reference(x3, alpha, weight, bias),
                        atol=1e-5, rtol=1e-5), "3D widened mismatch"

    print("KERNEL_OK")
</pallas_src>

<mosaic_0001>
module attributes {stable_mosaic.version = 11 : i64} {
  func.func @_dyt_kernel(%arg0: i32, %arg1: i32, %arg2: memref<1x1xf32, #tpu.memory_space<smem>>, %arg3: memref<8x256xf32, #tpu.memory_space<vmem>>, %arg4: memref<8x1xf32, #tpu.memory_space<vmem>>, %arg5: memref<8x1xf32, #tpu.memory_space<vmem>>, %arg6: memref<8x256xf32, #tpu.memory_space<vmem>>) attributes {dimension_semantics = [#tpu.dimension_semantics<parallel>, #tpu.dimension_semantics<parallel>], iteration_bounds = array<i64: 1, 1>, scalar_prefetch = 0 : i64, scratch_operands = 0 : i64, tpu.core_type = #tpu.core_type<tc>, window_params = [{transform_indices = @transform_0, window_bounds = array<i64: 1, 1>}, {transform_indices = @transform_1, window_bounds = array<i64: 8, 256>}, {transform_indices = @transform_2, window_bounds = array<i64: 8, 1>}, {transform_indices = @transform_3, window_bounds = array<i64: 8, 1>}, {transform_indices = @transform_4, window_bounds = array<i64: 8, 256>}]} {
    %c0 = arith.constant 0 : index
    %c0_0 = arith.constant 0 : index
    %0 = memref.load %arg2[%c0, %c0_0] : memref<1x1xf32, #tpu.memory_space<smem>>
    %c0_1 = arith.constant 0 : index
    %c0_2 = arith.constant 0 : index
    %1 = vector.load %arg3[%c0_1, %c0_2] : memref<8x256xf32, #tpu.memory_space<vmem>>, vector<8x256xf32>
    %2 = vector.broadcast %0 : f32 to vector<8x256xf32>
    %3 = arith.mulf %2, %1 : vector<8x256xf32>
    %4 = math.tanh %3 : vector<8x256xf32>
    %c0_3 = arith.constant 0 : index
    %c0_4 = arith.constant 0 : index
    %5 = vector.load %arg4[%c0_3, %c0_4] : memref<8x1xf32, #tpu.memory_space<vmem>>, vector<8x1xf32>
    %6 = vector.broadcast %5 : vector<8x1xf32> to vector<8x256xf32>
    %7 = arith.mulf %4, %6 : vector<8x256xf32>
    %c0_5 = arith.constant 0 : index
    %c0_6 = arith.constant 0 : index
    %8 = vector.load %arg5[%c0_5, %c0_6] : memref<8x1xf32, #tpu.memory_space<vmem>>, vector<8x1xf32>
    %9 = vector.broadcast %8 : vector<8x1xf32> to vector<8x256xf32>
    %10 = arith.addf %7, %9 : vector<8x256xf32>
    %c0_7 = arith.constant 0 : index
    %c0_8 = arith.constant 0 : index
    %11 = vector.load %arg6[%c0_7, %c0_8] : memref<8x256xf32, #tpu.memory_space<vmem>>, vector<8x256xf32>
    tpu.vector_store %arg6[%c0_7, %c0_8], %10 {strides = array<i32>} : memref<8x256xf32, #tpu.memory_space<vmem>>, vector<8x256xf32>,
    return
  }
  func.func @transform_0(%arg0: i32, %arg1: i32) -> (i32, i32) {
    %c0_i32 = arith.constant 0 : i32
    %c0_i32_0 = arith.constant 0 : i32
    %c0_i32_1 = arith.constant 0 : i32
    return %c0_i32, %c0_i32_0 : i32, i32
  }
  func.func @transform_1(%arg0: i32, %arg1: i32) -> (i32, i32) {
    %c0_i32 = arith.constant 0 : i32
    return %arg0, %arg1 : i32, i32
  }
  func.func @transform_2(%arg0: i32, %arg1: i32) -> (i32, i32) {
    %c0_i32 = arith.constant 0 : i32
    %c0_i32_0 = arith.constant 0 : i32
    return %arg0, %c0_i32 : i32, i32
  }
  func.func @transform_3(%arg0: i32, %arg1: i32) -> (i32, i32) {
    %c0_i32 = arith.constant 0 : i32
    %c0_i32_0 = arith.constant 0 : i32
    return %arg0, %c0_i32 : i32, i32
  }
  func.func @transform_4(%arg0: i32, %arg1: i32) -> (i32, i32) {
    %c0_i32 = arith.constant 0 : i32
    return %arg0, %arg1 : i32, i32
  }
}

</mosaic_0001>

<llo_original>
// kernel: dyt_forward.1
$region0: #{dyt_forward.1}
  #allocation0 [shape = 'u32[]', space=smem, size = 0x4, offset = 0x4, fixed_abs, tag = 'smem constant byte address 0x4 - core index']
  #allocation1 [shape = 'u32[144,128]{1,0:T(1,128)}', space=vmem, size = 0x12000, scoped, tag = 'internal scratch']
  #allocation2 [shape = 'f32[1,1]{1,0:T(1,128)S(6)}', space=smem, size = 0x200, scoped, tag = 'scoped memory for dyt_forward.1']
  %s0 = inlined_call_operand.<no memory space> [shape: f32[1,1], index: 0, kind: input, shape index: {}]
  %s1 = inlined_call_operand.vmem [shape: f32[8,256], index: 1, kind: input, shape index: {}]
  %s2 = inlined_call_operand.vmem [shape: f32[8,1], index: 2, kind: input, shape index: {}]
  %s3 = inlined_call_operand.vmem [shape: f32[8,1], index: 3, kind: input, shape index: {}]
  %s4 = inlined_call_operand.vmem [shape: f32[8,256], index: 4, kind: output, shape index: {}]
  %s5 = sld [smem:[#allocation0]]
  $region26: #{dyt_forward.1} parent=0
    _
  %s7 = ssub.s32 1, %s5
  %s8 = scalar_select 0, %s7, %s5
  %9 = sst [smem:[#allocation2]] %s0
  // Predicated region
  $region2: #{dyt_forward.1} parent=0 // pred_check
    _
  $region3: #{dyt_forward.1} parent=0 // pred_check_branch
    %11 = sbr.rel (0) target = $region5
  $region4: #{dyt_forward.1} parent=0 // pred_region
    _
  $region5: #{dyt_forward.1} parent=0 // pred_fallthru
    _
  // Predicated region
  $region6: #{dyt_forward.1} parent=0 // pred_check
    _
  $region7: #{dyt_forward.1} parent=0 // pred_check_branch
    %13 = sbr.rel (0) target = $region9
  $region8: #{dyt_forward.1} parent=0 // pred_region
    _
  $region9: #{dyt_forward.1} parent=0 // pred_fallthru
    _
  // Predicated region
  $region10: #{dyt_forward.1} parent=0 // pred_check
    _
  $region11: #{dyt_forward.1} parent=0 // pred_check_branch
    %15 = sbr.rel (0) target = $region13
  $region12: #{dyt_forward.1} parent=0 // pred_region
    _
  $region13: #{dyt_forward.1} parent=0 // pred_fallthru
    _
  // Predicated region
  $region14: #{dyt_forward.1} parent=0 // pred_check
    _
  $region15: #{dyt_forward.1} parent=0 // pred_check_branch
    %17 = sbr.rel (0) target = $region17
  $region16: #{dyt_forward.1} parent=0 // pred_region
    _
  $region17: #{dyt_forward.1} parent=0 // pred_fallthru
    _
  %s18 = sld [smem:[#allocation2]]
  %v19 = vld [vmem:[%s1] sm:$0xff]
  %v20 = vld [vmem:[%s1 + $0x8] sm:$0xff]
  %v21 = vstv %s18
  %v22 = vmul.f32 %v21, %v19
  %v23 = vmul.f32 %v21, %v20
  %v24 = vtanh.pop %v22
  %v25 = vtanh.pop %v23
  %v26 = vld [vmem:[%s2] sm:$0xff]
  %28 = vset.pattern.permute.xlu0 0
  %29 = vperm.xlu0 %28, %v26
  %v30 = vpop.permute.xlu0 %29
  %v32 = vmul.f32 %v24, %v30
  %v33 = vmul.f32 %v25, %v30
  %v34 = vld [vmem:[%s3] sm:$0xff]
  %36 = vset.pattern.permute.xlu0 0
  %37 = vperm.xlu0 %36, %v34
  %v38 = vpop.permute.xlu0 %37
  %v40 = vadd.f32 %v32, %v38
  %v41 = vadd.f32 %v33, %v38
  %42 = vst [vmem:[%s4] sm:$0xff] %v40
  %43 = vst [vmem:[%s4 + $0x8] sm:$0xff] %v41
  // Predicated region
  $region18: #{dyt_forward.1} parent=0 // pred_check
    _
  $region19: #{dyt_forward.1} parent=0 // pred_check_branch
    %45 = sbr.rel (0) target = $region21
  $region20: #{dyt_forward.1} parent=0 // pred_region
    _
  $region21: #{dyt_forward.1} parent=0 // pred_fallthru
    _
  // Predicated region
  $region22: #{dyt_forward.1} parent=0 // pred_check
    _
  $region23: #{dyt_forward.1} parent=0 // pred_check_branch
    %47 = sbr.rel (0) target = $region25
  $region24: #{dyt_forward.1} parent=0 // pred_region
    _
  $region25: #{dyt_forward.1} parent=0 // pred_fallthru
    _

</llo_original>
